<compile_context>
chip_gen: v5e
topology: v5e:2x2
jax: 0.10.0
libtpu: 0.0.40
codegen_flags: <defaults>
</compile_context>

<pallas_src>
import functools

import jax
import jax.numpy as jnp
import numpy as np
from jax.experimental import pallas as pl
from jax.experimental.pallas import tpu as pltpu


def _convblock_kernel(x_ref, w_ref, o_ref, *, NBLK, H, W, Cout, P, K):
    """One batch chunk per grid step.

    x_ref: (NBLK, H, K)          im2row-over-KH rows + constant-1 bias lane, bf16 (VMEM)
    w_ref: (K, W*Cout)           Toeplitz conv weight + bias row, pool-phase-major cols (VMEM)
    o_ref: (NBLK, Ho, Wo*Cout)   pooled output, lane-dense f32 (VMEM)
    """
    M = NBLK * H
    Ho, Wo = H // P, W // P
    G = Wo * Cout                     # lanes per pooling phase

    # ---- conv (+ fused bias): one lane-dense MXU matmul, f32 accumulation ----
    acc = jnp.dot(x_ref[...].reshape(M, K), w_ref[...],
                  preferred_element_type=jnp.float32)        # (M, W*Cout)

    # ---- ReLU on the lane-dense activation (VPU) ----
    y = jnp.maximum(acc, 0.0)

    # ---- PxP max-pool, stride P ----
    # H-pool: consecutive row groups (rows are (n, h); H % P == 0, so groups never
    # cross image boundaries). Minor dim preserved -> cheap reshape.
    hmax = jnp.max(y.reshape(NBLK * Ho, P, W * Cout), axis=1)     # (NBLK*Ho, W*Cout)

    # W-pool: weight columns are pool-phase-major (phase = w % P), so the P pooling
    # phases are contiguous G-lane slabs -> plain slices + maximum.
    pooled = hmax[:, 0:G]
    for p in range(1, P):
        pooled = jnp.maximum(pooled, hmax[:, p * G:(p + 1) * G])   # (NBLK*Ho, Wo*Cout)

    o_ref[...] = pooled.reshape(NBLK, Ho, G).astype(o_ref.dtype)


def make_conv_block(weight_oihw, bias, *, input_hw, padding=1, pool=2,
                    batch_block=None, mxu_dtype=jnp.bfloat16):
    """Build a jitted ConvBlock forward: x (NCHW) -> maxpool(relu(conv(x))) (NCHW).

    All weight-side transforms (Toeplitz/im2row weight construction, bias fold) run
    once, host-side, here; the returned callable only does the per-call input
    transform + one pallas_call.
    """
    weight = np.asarray(weight_oihw, np.float32)
    bias = np.asarray(bias, np.float32)
    Cout, Cin, KH, KW = weight.shape
    H_in, W_in = input_hw
    H = H_in + 2 * padding - KH + 1          # conv output height (stride_conv = 1)
    W = W_in + 2 * padding - KW + 1
    assert H % pool == 0 and W % pool == 0
    Ho, Wo = H // pool, W // pool
    Hp, Wp = H + KH - 1, W + KW - 1          # padded spatial extents
    Kc = KH * Wp * Cin                       # contraction length of the conv part
    K = Kc + 8                               # +8 sublane-aligned lanes; lane Kc carries the bias

    # ---- one-time Toeplitz (im2row-over-KH) weight, pool-phase-major columns ----
    #   wmat[kh*Wp*Cin + (ow+kw)*Cin + c, (ow%P)*Wo*Cout + (ow//P)*Cout + o] = w[o,c,kh,kw]
    kh_i, kw_i, ow_i, c_i, o_i = np.indices((KH, KW, W, Cin, Cout))
    rows = kh_i * (Wp * Cin) + (ow_i + kw_i) * Cin + c_i
    cols = (ow_i % pool) * (Wo * Cout) + (ow_i // pool) * Cout + o_i
    vals = np.broadcast_to(
        np.transpose(weight, (2, 3, 1, 0))[:, :, None, :, :], (KH, KW, W, Cin, Cout))
    wmat = np.zeros((K, W * Cout), np.float32)
    wmat[rows, cols] = vals                  # indices are injective (no collisions)
    wmat[Kc, :] = np.tile(bias, W)           # bias row: column j -> bias[j % Cout]
    wmat = jnp.asarray(wmat, mxu_dtype)

    base_kernel = functools.partial(_convblock_kernel, H=H, W=W, Cout=Cout, P=pool, K=K)

    def fwd(x_nchw):
        N = x_nchw.shape[0]
        # Whole batch per grid step by default (amortizes per-step overhead at small N).
        # When batching beyond that: pick batch_block so M = NBLK*H >= 256 on v6e/v7x
        # (>= 128 on v5e) and the grid has >= 2 steps on v7x (2 TensorCores). VMEM is
        # never the limiter at realistic NBLK.
        NBLK = batch_block or N
        assert N % NBLK == 0

        # ---- per-call input transform (XLA-fused): NCHW -> padded lane-dense rows
        #      -> im2row over KH -> bf16, plus the constant-1 bias lane ----
        x = jnp.transpose(x_nchw, (0, 2, 3, 1)).astype(mxu_dtype)            # NHWC
        x = jnp.pad(x, ((0, 0), (padding, padding), (padding, padding), (0, 0)))
        x = x.reshape(N, Hp, Wp * Cin)
        taps = [x[:, kh:kh + H, :] for kh in range(KH)]                      # KH shifted windows
        ones = jnp.zeros((N, H, 8), mxu_dtype).at[:, :, 0].set(1)            # bias lane + zero pad
        lhs = jnp.concatenate(taps + [ones], axis=-1)                        # (N, H, K)

        out = pl.pallas_call(
            functools.partial(base_kernel, NBLK=NBLK),
            out_shape=jax.ShapeDtypeStruct((N, Ho, Wo * Cout), jnp.float32),
            grid_spec=pltpu.PrefetchScalarGridSpec(
                num_scalar_prefetch=0,
                grid=(N // NBLK,),                                           # batch chunks
                in_specs=[
                    pl.BlockSpec((NBLK, H, K), lambda i: (i, 0, 0)),
                    pl.BlockSpec((K, W * Cout), lambda i: (0, 0)),           # weight stays resident
                ],
                out_specs=pl.BlockSpec((NBLK, Ho, Wo * Cout), lambda i: (i, 0, 0)),
            ),
            compiler_params=pltpu.CompilerParams(
                dimension_semantics=("parallel",)),
        )(lhs, wmat)

        # ---- glue: lane-dense kernel layout -> NCHW (tiny interop transpose) ----
        return jnp.transpose(out.reshape(N, Ho, Wo, Cout), (0, 3, 1, 2))

    return jax.jit(fwd)


if __name__ == "__main__":
    key = jax.random.PRNGKey(0)
    kx, kw_, kb = jax.random.split(key, 3)

    N, Cin, Hs, Ws = 2, 4, 16, 16
    Cout, KH, KW = 8, 3, 3

    # deterministic synthetic params (PyTorch-style uniform(-1/sqrt(fan_in), ..))
    fan_in = Cin * KH * KW
    bound = 1.0 / np.sqrt(fan_in)
    x = jax.random.normal(kx, (N, Cin, Hs, Ws), jnp.float32)
    weight = jax.random.uniform(kw_, (Cout, Cin, KH, KW), jnp.float32, -bound, bound)
    bias = jax.random.uniform(kb, (Cout,), jnp.float32, -bound, bound)

    conv_block = make_conv_block(weight, bias, input_hw=(Hs, Ws), padding=1, pool=2)
    out = jax.block_until_ready(conv_block(x))
    assert out.shape == (N, Cout, Hs // 2, Ws // 2), out.shape

    # pure-JAX reference for sanity
    ref = jax.lax.conv_general_dilated(
        x, weight, window_strides=(1, 1), padding=((1, 1), (1, 1)),
        dimension_numbers=("NCHW", "OIHW", "NCHW"),
        precision=jax.lax.Precision.HIGHEST)
    ref = jnp.maximum(ref + bias[None, :, None, None], 0.0)
    ref = jax.lax.reduce_window(ref, -jnp.inf, jax.lax.max,
                                (1, 1, 2, 2), (1, 1, 2, 2), "VALID")
    # bf16 MXU operands with f32 accumulation: tolerance sized for the operand cast.
    np.testing.assert_allclose(np.asarray(out), np.asarray(ref),
                               atol=2e-2, rtol=2e-2)
    print("KERNEL_OK")
</pallas_src>

<mosaic_0001>
module attributes {stable_mosaic.version = 11 : i64} {
  func.func @_convblock_kernel(%arg0: i32, %arg1: memref<2x16x224xbf16, #tpu.memory_space<vmem>>, %arg2: memref<224x128xbf16, #tpu.memory_space<vmem>>, %arg3: memref<2x8x64xf32, #tpu.memory_space<vmem>>) attributes {dimension_semantics = [#tpu.dimension_semantics<parallel>], iteration_bounds = array<i64: 1>, scalar_prefetch = 0 : i64, scratch_operands = 0 : i64, tpu.core_type = #tpu.core_type<tc>, window_params = [{transform_indices = @transform_0, window_bounds = array<i64: 2, 16, 224>}, {pipeline_mode = #tpu.pipeline_mode<synchronous>, transform_indices = @transform_1, window_bounds = array<i64: 224, 128>}, {transform_indices = @transform_2, window_bounds = array<i64: 2, 8, 64>}]} {
    %c0 = arith.constant 0 : index
    %c0_0 = arith.constant 0 : index
    %c0_1 = arith.constant 0 : index
    %0 = vector.load %arg1[%c0, %c0_0, %c0_1] : memref<2x16x224xbf16, #tpu.memory_space<vmem>>, vector<2x16x224xbf16>
    %1 = vector.shape_cast %0 : vector<2x16x224xbf16> to vector<32x224xbf16>
    %c0_2 = arith.constant 0 : index
    %c0_3 = arith.constant 0 : index
    %2 = vector.load %arg2[%c0_2, %c0_3] : memref<224x128xbf16, #tpu.memory_space<vmem>>, vector<224x128xbf16>
    %cst = arith.constant dense<0.000000e+00> : vector<32x128xf32>
    %3 = tpu.matmul %1, %2, %cst {dimension_numbers = #tpu.dot_dimension_numbers<[1], [0], [0], [1], [0, 0, 1, 1], [], []>} : vector<32x224xbf16>, vector<224x128xbf16>, vector<32x128xf32> -> vector<32x128xf32>
    %cst_4 = arith.constant 0.000000e+00 : f32
    %4 = vector.broadcast %cst_4 : f32 to vector<32x128xf32>
    %5 = arith.maximumf %3, %4 : vector<32x128xf32>
    %6 = vector.shape_cast %5 : vector<32x128xf32> to vector<16x2x128xf32>
    %cst_5 = arith.constant dense<0xFF800000> : vector<16x128xf32>
    %7 = vector.multi_reduction <maximumf>, %6, %cst_5 [1] : vector<16x2x128xf32> to vector<16x128xf32>
    %8 = vector.extract_strided_slice %7 {offsets = [0, 0], sizes = [16, 64], strides = [1, 1]} : vector<16x128xf32> to vector<16x64xf32>
    %9 = vector.extract_strided_slice %7 {offsets = [0, 64], sizes = [16, 64], strides = [1, 1]} : vector<16x128xf32> to vector<16x64xf32>
    %10 = arith.maximumf %8, %9 : vector<16x64xf32>
    %11 = vector.shape_cast %10 : vector<16x64xf32> to vector<2x8x64xf32>
    %c0_6 = arith.constant 0 : index
    %c0_7 = arith.constant 0 : index
    %c0_8 = arith.constant 0 : index
    %12 = vector.load %arg3[%c0_6, %c0_7, %c0_8] : memref<2x8x64xf32, #tpu.memory_space<vmem>>, vector<2x8x64xf32>
    tpu.vector_store %arg3[%c0_6, %c0_7, %c0_8], %11 {strides = array<i32>} : memref<2x8x64xf32, #tpu.memory_space<vmem>>, vector<2x8x64xf32>,
    return
  }
  func.func @transform_0(%arg0: i32) -> (i32, i32, i32) {
    %c0_i32 = arith.constant 0 : i32
    %c0_i32_0 = arith.constant 0 : i32
    %c0_i32_1 = arith.constant 0 : i32
    return %arg0, %c0_i32, %c0_i32_0 : i32, i32, i32
  }
  func.func @transform_1(%arg0: i32) -> (i32, i32) {
    %c0_i32 = arith.constant 0 : i32
    %c0_i32_0 = arith.constant 0 : i32
    %c0_i32_1 = arith.constant 0 : i32
    return %c0_i32, %c0_i32_0 : i32, i32
  }
  func.func @transform_2(%arg0: i32) -> (i32, i32, i32) {
    %c0_i32 = arith.constant 0 : i32
    %c0_i32_0 = arith.constant 0 : i32
    %c0_i32_1 = arith.constant 0 : i32
    return %arg0, %c0_i32, %c0_i32_0 : i32, i32, i32
  }
}

</mosaic_0001>

<llo_original>
// kernel: fwd.1
$region0: #{fwd.1}
  #allocation0 [shape = 'u32[]', space=smem, size = 0x4, offset = 0x4, fixed_abs, tag = 'smem constant byte address 0x4 - core index']
  #allocation1 [shape = 'u32[72,128]{1,0:T(1,128)}', space=vmem, size = 0x9000, scoped, tag = 'internal scratch']
  %s0 = inlined_call_operand.vmem [shape: bf16[2,16,224], index: 0, kind: input, shape index: {}]
  %s1 = inlined_call_operand.vmem [shape: bf16[224,128], index: 1, kind: input, shape index: {}]
  %s2 = inlined_call_operand.vmem [shape: f32[2,8,64], index: 2, kind: output, shape index: {}]
  %s3 = sld [smem:[#allocation0]]
  $region18: #{fwd.1} parent=0
    _
  %s5 = ssub.s32 1, %s3
  %s6 = scalar_select 0, %s5, %s3
  // Predicated region
  $region2: #{fwd.1} parent=0 // pred_check
    _
  $region3: #{fwd.1} parent=0 // pred_check_branch
    %8 = sbr.rel (0) target = $region5
  $region4: #{fwd.1} parent=0 // pred_region
    _
  $region5: #{fwd.1} parent=0 // pred_fallthru
    _
  // Predicated region
  $region6: #{fwd.1} parent=0 // pred_check
    _
  $region7: #{fwd.1} parent=0 // pred_check_branch
    %10 = sbr.rel (0) target = $region9
  $region8: #{fwd.1} parent=0 // pred_region
    _
  $region9: #{fwd.1} parent=0 // pred_fallthru
    _
  %v12 = vld [vmem:[%s0] sm:$0xff]
  %v13 = vld [vmem:[%s0 + $0x8] sm:$0xff]
  %v14 = vld [vmem:[%s0 + $0x10] sm:$0xff]
  %v15 = vld [vmem:[%s0 + $0x18] sm:$0xff]
  %v16 = vld [vmem:[%s1] sm:$0xf]
  %v17 = vld [vmem:[%s1 + $0x4] sm:$0xf]
  %v18 = vld [vmem:[%s1 + $0x8] sm:$0xf]
  %v19 = vld [vmem:[%s1 + $0xc] sm:$0xf]
  %v20 = vld [vmem:[%s1 + $0x10] sm:$0xf]
  %v21 = vld [vmem:[%s1 + $0x14] sm:$0xf]
  %v22 = vld [vmem:[%s1 + $0x18] sm:$0xf]
  %v23 = vld [vmem:[%s1 + $0x1c] sm:$0xf]
  %v24 = vld [vmem:[%s1 + $0x20] sm:$0xf]
  %v25 = vld [vmem:[%s1 + $0x24] sm:$0xf]
  %v26 = vld [vmem:[%s1 + $0x28] sm:$0xf]
  %v27 = vld [vmem:[%s1 + $0x2c] sm:$0xf]
  %v28 = vld [vmem:[%s1 + $0x30] sm:$0xf]
  %v29 = vld [vmem:[%s1 + $0x34] sm:$0xf]
  %v30 = vld [vmem:[%s1 + $0x38] sm:$0xf]
  %v31 = vld [vmem:[%s1 + $0x3c] sm:$0xf]
  %v32 = vld [vmem:[%s1 + $0x40] sm:$0xf]
  %v33 = vld [vmem:[%s1 + $0x44] sm:$0xf]
  %v34 = vld [vmem:[%s1 + $0x48] sm:$0xf]
  %v35 = vld [vmem:[%s1 + $0x4c] sm:$0xf]
  %v36 = vld [vmem:[%s1 + $0x50] sm:$0xf]
  %v37 = vld [vmem:[%s1 + $0x54] sm:$0xf]
  %v38 = vld [vmem:[%s1 + $0x58] sm:$0xf]
  %v39 = vld [vmem:[%s1 + $0x5c] sm:$0xf]
  %v40 = vld [vmem:[%s1 + $0x60] sm:$0xf]
  %v41 = vld [vmem:[%s1 + $0x64] sm:$0xf]
  %v42 = vld [vmem:[%s1 + $0x68] sm:$0xf]
  %v43 = vld [vmem:[%s1 + $0x6c] sm:$0xf]
  %v48 = vunpack.c.l.b16 %v12
  %v49 = vunpack.c.h.b16 %v12
  %v50 = vunpack.c.l.b16 %v13
  %v51 = vunpack.c.h.b16 %v13
  %v52 = vunpack.c.l.b16 %v14
  %v53 = vunpack.c.h.b16 %v14
  %v54 = vunpack.c.l.b16 %v15
  %v55 = vunpack.c.h.b16 %v15
  %v56 = vpack.c.b16 %v50, %v48
  %v57 = vpack.c.b16 %v51, %v49
  %v58 = vpack.c.b16 %v54, %v52
  %v59 = vpack.c.b16 %v55, %v53
  %v90 = vunpack.c.l.b16 %v16
  %v91 = vunpack.c.l.b16 %v17
  %v92 = vunpack.c.l.b16 %v18
  %v93 = vunpack.c.l.b16 %v19
  %v94 = vunpack.c.l.b16 %v20
  %v95 = vunpack.c.l.b16 %v21
  %v96 = vunpack.c.l.b16 %v22
  %v97 = vunpack.c.l.b16 %v23
  %v98 = vunpack.c.l.b16 %v24
  %v99 = vunpack.c.l.b16 %v25
  %v100 = vunpack.c.l.b16 %v26
  %v101 = vunpack.c.l.b16 %v27
  %v102 = vunpack.c.l.b16 %v28
  %v103 = vunpack.c.l.b16 %v29
  %v104 = vunpack.c.l.b16 %v30
  %v105 = vunpack.c.l.b16 %v31
  %v106 = vunpack.c.l.b16 %v32
  %v107 = vunpack.c.l.b16 %v33
  %v108 = vunpack.c.l.b16 %v34
  %v109 = vunpack.c.l.b16 %v35
  %v110 = vunpack.c.l.b16 %v36
  %v111 = vunpack.c.l.b16 %v37
  %v112 = vunpack.c.l.b16 %v38
  %v113 = vunpack.c.l.b16 %v39
  %v114 = vunpack.c.l.b16 %v40
  %v115 = vunpack.c.l.b16 %v41
  %v116 = vunpack.c.l.b16 %v42
  %v117 = vunpack.c.l.b16 %v43
  %v118 = vpack.c.b16 %v91, %v90
  %v119 = vpack.c.b16 %v93, %v92
  %v120 = vpack.c.b16 %v95, %v94
  %v121 = vpack.c.b16 %v97, %v96
  %v122 = vpack.c.b16 %v99, %v98
  %v123 = vpack.c.b16 %v101, %v100
  %v124 = vpack.c.b16 %v103, %v102
  %v125 = vpack.c.b16 %v105, %v104
  %v126 = vpack.c.b16 %v107, %v106
  %v127 = vpack.c.b16 %v109, %v108
  %v128 = vpack.c.b16 %v111, %v110
  %v129 = vpack.c.b16 %v113, %v112
  %v130 = vpack.c.b16 %v115, %v114
  %v131 = vpack.c.b16 %v117, %v116
  %vm146 = vcmask 785408
  %v148 = vsel %vm146, %v57, 0
  %v151 = vsel %vm146, %v59, 0
  %153 = vmatpush.bf16.msra.mxu0 %v125
  %154 = vmatpush.bf16.msra.mxu0 %v124
  %155 = vmatpush.bf16.msra.mxu0 %v123
  %156 = vmatpush.bf16.msra.mxu0 %v122
  %157 = vmatpush.bf16.msra.mxu0 %v121
  %158 = vmatpush.bf16.msra.mxu0 %v120
  %159 = vmatpush.bf16.msra.mxu0 %v119
  %160 = vmatpush.bf16.msra.mxu0 %v118
  %161 = vmatmul.bf16.gmra.mxu0 %v56
  %v162 = vpop.f32.mrf.mxu0
  %v163 = vadd.f32 0.0, %v162
  %v164 = vpop.f32.mrf.mxu0
  %v165 = vadd.f32 0.0, %v164
  %166 = vmatmul.bf16.gmra.mxu0 %v58
  %v167 = vpop.f32.mrf.mxu0
  %v168 = vadd.f32 0.0, %v167
  %v169 = vpop.f32.mrf.mxu0
  %v170 = vadd.f32 0.0, %v169
  %171 = vdwg.mxu0
  %172 = vmatpush.bf16.msra.mxu0 0
  %173 = vmatpush.bf16.msra.mxu0 0
  %174 = vmatpush.bf16.msra.mxu0 %v131
  %175 = vmatpush.bf16.msra.mxu0 %v130
  %176 = vmatpush.bf16.msra.mxu0 %v129
  %177 = vmatpush.bf16.msra.mxu0 %v128
  %178 = vmatpush.bf16.msra.mxu0 %v127
  %179 = vmatpush.bf16.msra.mxu0 %v126
  %180 = vmatmul.bf16.gmra.mxu0 %v148
  %v181 = vpop.f32.mrf.mxu0
  %v182 = vadd.f32 %v163, %v181
  %v183 = vpop.f32.mrf.mxu0
  %v184 = vadd.f32 %v165, %v183
  %185 = vmatmul.bf16.gmra.mxu0 %v151
  %v186 = vpop.f32.mrf.mxu0
  %v187 = vadd.f32 %v168, %v186
  %v188 = vpop.f32.mrf.mxu0
  %v189 = vadd.f32 %v170, %v188
  %190 = vdwg.mxu0
  %v191 = vmax.f32 %v182, 0.0
  %v192 = vmax.f32 %v184, 0.0
  %v193 = vmax.f32 %v187, 0.0
  %v194 = vmax.f32 %v189, 0.0
  %v199 = vrot.slane %v191, 2
  %v200 = vrot.slane %v191, 4
  %v201 = vrot.slane %v191, 6
  %v202 = vrot.slane %v192, 2
  %v203 = vrot.slane %v192, 4
  %v204 = vrot.slane %v192, 6
  %v205 = vrot.slane %v193, 2
  %v206 = vrot.slane %v193, 4
  %v207 = vrot.slane %v193, 6
  %v208 = vrot.slane %v194, 2
  %v209 = vrot.slane %v194, 4
  %v210 = vrot.slane %v194, 6
  %vm223 = vcmask 1041408
  %v224 = vsel %vm223, %v191, -inf
  %v225 = vrot.slane %v224, 4
  %v226 = vmax.f32 %v224, %v225
  %v227 = vrot.slane %v226, 2
  %v228 = vmax.f32 %v226, %v227
  %v229 = vrot.slane %v228, 1
  %v230 = vmax.f32 %v228, %v229
  %v231 = vsel %vm223, %v199, -inf
  %v232 = vrot.slane %v231, 4
  %v233 = vmax.f32 %v231, %v232
  %v234 = vrot.slane %v233, 2
  %v235 = vmax.f32 %v233, %v234
  %v236 = vrot.slane %v235, 1
  %v237 = vmax.f32 %v235, %v236
  %v238 = vsel %vm223, %v200, -inf
  %v239 = vrot.slane %v238, 4
  %v240 = vmax.f32 %v238, %v239
  %v241 = vrot.slane %v240, 2
  %v242 = vmax.f32 %v240, %v241
  %v243 = vrot.slane %v242, 1
  %v244 = vmax.f32 %v242, %v243
  %v245 = vsel %vm223, %v201, -inf
  %v246 = vrot.slane %v245, 4
  %v247 = vmax.f32 %v245, %v246
  %v248 = vrot.slane %v247, 2
  %v249 = vmax.f32 %v247, %v248
  %v250 = vrot.slane %v249, 1
  %v251 = vmax.f32 %v249, %v250
  %v252 = vsel %vm223, %v192, -inf
  %v253 = vrot.slane %v252, 4
  %v254 = vmax.f32 %v252, %v253
  %v255 = vrot.slane %v254, 2
  %v256 = vmax.f32 %v254, %v255
  %v257 = vrot.slane %v256, 1
  %v258 = vmax.f32 %v256, %v257
  %v259 = vsel %vm223, %v202, -inf
  %v260 = vrot.slane %v259, 4
  %v261 = vmax.f32 %v259, %v260
  %v262 = vrot.slane %v261, 2
  %v263 = vmax.f32 %v261, %v262
  %v264 = vrot.slane %v263, 1
  %v265 = vmax.f32 %v263, %v264
  %v266 = vsel %vm223, %v203, -inf
  %v267 = vrot.slane %v266, 4
  %v268 = vmax.f32 %v266, %v267
  %v269 = vrot.slane %v268, 2
  %v270 = vmax.f32 %v268, %v269
  %v271 = vrot.slane %v270, 1
  %v272 = vmax.f32 %v270, %v271
  %v273 = vsel %vm223, %v204, -inf
  %v274 = vrot.slane %v273, 4
  %v275 = vmax.f32 %v273, %v274
  %v276 = vrot.slane %v275, 2
  %v277 = vmax.f32 %v275, %v276
  %v278 = vrot.slane %v277, 1
  %v279 = vmax.f32 %v277, %v278
  %v280 = vsel %vm223, %v193, -inf
  %v281 = vrot.slane %v280, 4
  %v282 = vmax.f32 %v280, %v281
  %v283 = vrot.slane %v282, 2
  %v284 = vmax.f32 %v282, %v283
  %v285 = vrot.slane %v284, 1
  %v286 = vmax.f32 %v284, %v285
  %v287 = vsel %vm223, %v205, -inf
  %v288 = vrot.slane %v287, 4
  %v289 = vmax.f32 %v287, %v288
  %v290 = vrot.slane %v289, 2
  %v291 = vmax.f32 %v289, %v290
  %v292 = vrot.slane %v291, 1
  %v293 = vmax.f32 %v291, %v292
  %v294 = vsel %vm223, %v206, -inf
  %v295 = vrot.slane %v294, 4
  %v296 = vmax.f32 %v294, %v295
  %v297 = vrot.slane %v296, 2
  %v298 = vmax.f32 %v296, %v297
  %v299 = vrot.slane %v298, 1
  %v300 = vmax.f32 %v298, %v299
  %v301 = vsel %vm223, %v207, -inf
  %v302 = vrot.slane %v301, 4
  %v303 = vmax.f32 %v301, %v302
  %v304 = vrot.slane %v303, 2
  %v305 = vmax.f32 %v303, %v304
  %v306 = vrot.slane %v305, 1
  %v307 = vmax.f32 %v305, %v306
  %v308 = vsel %vm223, %v194, -inf
  %v309 = vrot.slane %v308, 4
  %v310 = vmax.f32 %v308, %v309
  %v311 = vrot.slane %v310, 2
  %v312 = vmax.f32 %v310, %v311
  %v313 = vrot.slane %v312, 1
  %v314 = vmax.f32 %v312, %v313
  %v315 = vsel %vm223, %v208, -inf
  %v316 = vrot.slane %v315, 4
  %v317 = vmax.f32 %v315, %v316
  %v318 = vrot.slane %v317, 2
  %v319 = vmax.f32 %v317, %v318
  %v320 = vrot.slane %v319, 1
  %v321 = vmax.f32 %v319, %v320
  %v322 = vsel %vm223, %v209, -inf
  %v323 = vrot.slane %v322, 4
  %v324 = vmax.f32 %v322, %v323
  %v325 = vrot.slane %v324, 2
  %v326 = vmax.f32 %v324, %v325
  %v327 = vrot.slane %v326, 1
  %v328 = vmax.f32 %v326, %v327
  %v329 = vsel %vm223, %v210, -inf
  %v330 = vrot.slane %v329, 4
  %v331 = vmax.f32 %v329, %v330
  %v332 = vrot.slane %v331, 2
  %v333 = vmax.f32 %v331, %v332
  %v334 = vrot.slane %v333, 1
  %v335 = vmax.f32 %v333, %v334
  %352 = vrot.lane.b32.xlu0 %v230, 64
  %v353 = vpop.permute.xlu0 %352
  %354 = vrot.lane.b32.xlu0 %v237, 64
  %v355 = vpop.permute.xlu0 %354
  %356 = vrot.lane.b32.xlu0 %v244, 64
  %v357 = vpop.permute.xlu0 %356
  %358 = vrot.lane.b32.xlu0 %v251, 64
  %v359 = vpop.permute.xlu0 %358
  %360 = vrot.lane.b32.xlu0 %v258, 64
  %v361 = vpop.permute.xlu0 %360
  %362 = vrot.lane.b32.xlu0 %v265, 64
  %v363 = vpop.permute.xlu0 %362
  %364 = vrot.lane.b32.xlu0 %v272, 64
  %v365 = vpop.permute.xlu0 %364
  %366 = vrot.lane.b32.xlu0 %v279, 64
  %v367 = vpop.permute.xlu0 %366
  %368 = vrot.lane.b32.xlu0 %v286, 64
  %v369 = vpop.permute.xlu0 %368
  %370 = vrot.lane.b32.xlu0 %v293, 64
  %v371 = vpop.permute.xlu0 %370
  %372 = vrot.lane.b32.xlu0 %v300, 64
  %v373 = vpop.permute.xlu0 %372
  %374 = vrot.lane.b32.xlu0 %v307, 64
  %v375 = vpop.permute.xlu0 %374
  %376 = vrot.lane.b32.xlu0 %v314, 64
  %v377 = vpop.permute.xlu0 %376
  %378 = vrot.lane.b32.xlu0 %v321, 64
  %v379 = vpop.permute.xlu0 %378
  %380 = vrot.lane.b32.xlu0 %v328, 64
  %v381 = vpop.permute.xlu0 %380
  %382 = vrot.lane.b32.xlu0 %v335, 64
  %v383 = vpop.permute.xlu0 %382
  %v400 = vmax.f32 %v230, %v353
  %v401 = vmax.f32 %v237, %v355
  %v402 = vmax.f32 %v244, %v357
  %v403 = vmax.f32 %v251, %v359
  %v404 = vmax.f32 %v258, %v361
  %v405 = vmax.f32 %v265, %v363
  %v406 = vmax.f32 %v272, %v365
  %v407 = vmax.f32 %v279, %v367
  %v408 = vmax.f32 %v286, %v369
  %v409 = vmax.f32 %v293, %v371
  %v410 = vmax.f32 %v300, %v373
  %v411 = vmax.f32 %v307, %v375
  %v412 = vmax.f32 %v314, %v377
  %v413 = vmax.f32 %v321, %v379
  %v414 = vmax.f32 %v328, %v381
  %v415 = vmax.f32 %v335, %v383
  %v432 = vrot.slane %v401, 7
  %vm433 = vcmask 1041409
  %v434 = vsel %vm433, %v432, %v400
  %v435 = vrot.slane %v402, 6
  %vm436 = vcmask 1042434
  %v437 = vsel %vm436, %v435, %v434
  %v438 = vrot.slane %v403, 5
  %vm439 = vcmask 1043459
  %v440 = vsel %vm439, %v438, %v437
  %v441 = vrot.slane %v404, 4
  %vm442 = vcmask 1044484
  %v443 = vsel %vm442, %v441, %v440
  %v444 = vrot.slane %v405, 3
  %vm445 = vcmask 1045509
  %v446 = vsel %vm445, %v444, %v443
  %v447 = vrot.slane %v406, 2
  %vm448 = vcmask 1046534
  %v449 = vsel %vm448, %v447, %v446
  %v450 = vrot.slane %v407, 1
  %vm451 = vcmask 1047559
  %v452 = vsel %vm451, %v450, %v449
  %v453 = vrot.slane %v409, 7
  %v454 = vsel %vm433, %v453, %v408
  %v455 = vrot.slane %v410, 6
  %v456 = vsel %vm436, %v455, %v454
  %v457 = vrot.slane %v411, 5
  %v458 = vsel %vm439, %v457, %v456
  %v459 = vrot.slane %v412, 4
  %v460 = vsel %vm442, %v459, %v458
  %v461 = vrot.slane %v413, 3
  %v462 = vsel %vm445, %v461, %v460
  %v463 = vrot.slane %v414, 2
  %v464 = vsel %vm448, %v463, %v462
  %v465 = vrot.slane %v415, 1
  %v466 = vsel %vm451, %v465, %v464
  %vm469 = vcmask 523264
  %470 = vst.msk [vmem:[%s2] sm:$0xff] %vm469, %v452
  %471 = vst.msk [vmem:[%s2 + $0x8] sm:$0xff] %vm469, %v466
  // Predicated region
  $region10: #{fwd.1} parent=0 // pred_check
    _
  $region11: #{fwd.1} parent=0 // pred_check_branch
    %473 = sbr.rel (0) target = $region13
  $region12: #{fwd.1} parent=0 // pred_region
    _
  $region13: #{fwd.1} parent=0 // pred_fallthru
    _
  // Predicated region
  $region14: #{fwd.1} parent=0 // pred_check
    _
  $region15: #{fwd.1} parent=0 // pred_check_branch
    %475 = sbr.rel (0) target = $region17
  $region16: #{fwd.1} parent=0 // pred_region
    _
  $region17: #{fwd.1} parent=0 // pred_fallthru
    _

</llo_original>
